<compile_context>
chip_gen: v6e
topology: v6e:2x2x1
jax: 0.10.0
libtpu: 0.0.40
codegen_flags: <defaults>
</compile_context>

<pallas_src>
import jax
import jax.numpy as jnp
from jax.experimental import pallas as pl
from jax.experimental.pallas import tpu as pltpu


# --------------------------------------------------------------------------- #
# Tiling helpers                                                              #
# --------------------------------------------------------------------------- #

def _round_up(x, m):
    return (x + m - 1) // m * m


def _round_down(x, m):
    return max(m, (x // m) * m)


def _min_sublanes(itemsize):
    # Sub-32-bit dtypes pack along sublanes: keep tiles a multiple of the packing.
    return {4: 8, 2: 16, 1: 32}.get(int(itemsize), 8)


def _vmem_capacity_bytes():
    try:
        return int(pltpu.get_tpu_info().vmem_capacity_bytes)
    except Exception:
        return 64 << 20  # conservative fallback (v7x physical VMEM)


def _vmem_limit_bytes(est_bytes, vmem_cap):
    # Raise the scoped-VMEM limit so the double-buffered tiles actually fit
    # (v5e default is only 16 MiB); always leave >=16 MiB of physical headroom.
    want = max(32 << 20, int(est_bytes) + (8 << 20))
    return int(min(want, vmem_cap - (16 << 20)))


# --------------------------------------------------------------------------- #
# Elementwise helpers shared by all kernel variants                            #
# --------------------------------------------------------------------------- #

def _elem_pow(xc, p, static_p):
    """clamp(x, eps)**p.  Positive-integer static p -> integer_pow (VPU only);
    every other case lowers to exp(p*log(x)) on the EUP."""
    if static_p is None:
        return jnp.exp(p * jnp.log(xc))
    sp = float(static_p)
    if sp == int(sp) and int(sp) >= 1:
        return jax.lax.integer_pow(xc, int(sp))
    return jnp.exp(sp * jnp.log(xc))


def _root_p(m, p, static_p):
    """m ** (1/p) for strictly positive m (m >= eps**p > 0)."""
    if static_p is None:
        return jnp.exp(jnp.log(m) / p)
    return m ** (1.0 / float(static_p))


# --------------------------------------------------------------------------- #
# Kernel factories                                                             #
# --------------------------------------------------------------------------- #

def _make_rows_kernel_single(*, eps, cols, static_p):
    """NCHW path, whole H*W in one lane block: (tm, cols) -> (tm, 1)."""
    dynamic = static_p is None

    def kernel(*refs):
        if dynamic:
            p_ref, x_ref, o_ref = refs
            p = p_ref[0]
        else:
            x_ref, o_ref = refs
            p = None
        x = x_ref[...].astype(jnp.float32)
        xp = _elem_pow(jnp.maximum(x, eps), p, static_p)
        m = jnp.sum(xp, axis=-1, keepdims=True) * (1.0 / cols)
        o_ref[...] = _root_p(m, p, static_p).astype(o_ref.dtype)

    return kernel


def _make_rows_kernel_coltiled(*, eps, cols, tc, static_p):
    """NCHW path, H*W tiled on an 'arbitrary' grid axis with a partial-sum
    scratch; init on col-tile 0, finalize (^(1/p)) on the last col tile."""
    dynamic = static_p is None
    need_mask = (cols % tc) != 0

    def kernel(*refs):
        if dynamic:
            p_ref, x_ref, o_ref, acc_ref = refs
            p = p_ref[0]
        else:
            x_ref, o_ref, acc_ref = refs
            p = None
        j = pl.program_id(1)

        @pl.when(j == 0)
        def _():
            acc_ref[...] = jnp.zeros_like(acc_ref)

        x = x_ref[...].astype(jnp.float32)
        xp = _elem_pow(jnp.maximum(x, eps), p, static_p)
        if need_mask:  # ragged last col tile: zero out padded lanes after the pow
            col = jax.lax.broadcasted_iota(jnp.int32, xp.shape, 1) + j * tc
            xp = jnp.where(col < cols, xp, 0.0)
        acc_ref[...] += jnp.sum(xp, axis=-1, keepdims=True)

        @pl.when(j == pl.num_programs(1) - 1)
        def _():
            m = acc_ref[...] * (1.0 / cols)
            o_ref[...] = _root_p(m, p, static_p).astype(o_ref.dtype)

    return kernel


def _make_tokens_kernel(*, eps, n_tokens, tn, static_p):
    """Tokens path: x block (tn, D), reduce over the token (sublane) axis into a
    resident lane-dense (1, D) f32 accumulator; finalize on the last token tile."""
    dynamic = static_p is None
    need_mask = (n_tokens % tn) != 0

    def kernel(*refs):
        if dynamic:
            p_ref, x_ref, o_ref, acc_ref = refs
            p = p_ref[0]
        else:
            x_ref, o_ref, acc_ref = refs
            p = None
        j = pl.program_id(1)

        @pl.when(j == 0)
        def _():
            acc_ref[...] = jnp.zeros_like(acc_ref)

        x = x_ref[...].astype(jnp.float32)                       # (tn, D)
        xp = _elem_pow(jnp.maximum(x, eps), p, static_p)
        if need_mask:  # ragged last token tile
            row = jax.lax.broadcasted_iota(jnp.int32, xp.shape, 0) + j * tn
            xp = jnp.where(row < n_tokens, xp, 0.0)
        acc_ref[...] += jnp.sum(xp, axis=0, keepdims=True)       # (1, D) lane-dense

        @pl.when(j == pl.num_programs(1) - 1)
        def _():
            m = acc_ref[...] * (1.0 / n_tokens)
            o_ref[...] = _root_p(m, p, static_p).astype(o_ref.dtype)

    return kernel


# --------------------------------------------------------------------------- #
# Wrapper                                                                      #
# --------------------------------------------------------------------------- #

def gem_pallas(x, p, eps=1e-6, work_with_tokens=False, static_p=None,
               stage_budget_bytes=None):
    """GeM pooling.

    x: (B, C, H, W) if not work_with_tokens else (B, N, D).
    p: shape-(1,) learnable exponent (used when static_p is None).
    static_p: optional Python float; bakes p into the kernel (positive-integer p
              avoids per-element transcendentals entirely).
    stage_budget_bytes: override of the per-pipeline-stage VMEM budget (tests).
    Returns (B, C, 1, 1) (or (B, D, 1, 1) for tokens), matching the PyTorch module.
    """
    eps = float(eps)
    itemsize = int(jnp.dtype(x.dtype).itemsize)
    min_rows = _min_sublanes(itemsize)
    vmem_cap = _vmem_capacity_bytes()
    if stage_budget_bytes is None:
        # One pipeline stage = one input buffer + its (lane-padded) output buffer.
        # ~12 MiB on v5e/v6e (128 MiB VMEM), ~8 MiB on v7x (64 MiB VMEM) so 2x
        # buffering leaves headroom everywhere once vmem_limit_bytes is raised.
        stage_budget_bytes = min(12 << 20, vmem_cap // 8)
    stage_budget_bytes = max(int(stage_budget_bytes), min_rows * 128 * itemsize)

    p_arr, p_spec = None, None
    if static_p is None:
        p_arr = jnp.asarray(p, dtype=jnp.float32).reshape(1)
        p_spec = pl.BlockSpec(memory_space=pltpu.MemorySpace.SMEM)

    # ----------------------------- tokens path ----------------------------- #
    if work_with_tokens:
        B, N, D = x.shape
        d_pad = _round_up(D, 128)
        tn = _round_down(stage_budget_bytes // (d_pad * itemsize), min_rows)
        tn = max(min_rows, tn)
        if N <= tn:
            tn = N  # full-extent token block
        n_n = pl.cdiv(N, tn)

        kernel = _make_tokens_kernel(eps=eps, n_tokens=N, tn=tn, static_p=static_p)
        x_spec = pl.BlockSpec((None, tn, D), lambda b, j: (b, j, 0))
        o_spec = pl.BlockSpec((None, 1, D), lambda b, j: (b, 0, 0))
        in_specs = [x_spec] if static_p is not None else [p_spec, x_spec]
        args = (x,) if static_p is not None else (p_arr, x)

        est = 2 * tn * d_pad * itemsize + 4 * 8 * d_pad * 4
        out = pl.pallas_call(
            kernel,
            out_shape=jax.ShapeDtypeStruct((B, 1, D), x.dtype),
            grid=(B, n_n),
            in_specs=in_specs,
            out_specs=o_spec,
            scratch_shapes=[pltpu.VMEM((1, D), jnp.float32)],
            compiler_params=pltpu.CompilerParams(
                # NOTE(v7x): if a trace shows one idle TensorCore, consider
                # pltpu.CORE_PARALLEL on the batch axis instead of "parallel".
                dimension_semantics=("parallel", "arbitrary"),
                vmem_limit_bytes=_vmem_limit_bytes(est, vmem_cap),
            ),
        )(*args)
        return out.reshape(B, D, 1, 1)

    # ------------------------------ NCHW path ------------------------------ #
    B, C, H, W = x.shape
    rows, cols = B * C, H * W
    x2d = x.reshape(rows, cols)                 # zero-copy metadata reshape
    cols_pad = _round_up(cols, 128)
    row_in_bytes = cols_pad * itemsize          # input VMEM bytes per row
    row_out_bytes = 128 * itemsize              # (tm, 1) output block lane-pads to 128

    if min_rows * row_in_bytes > stage_budget_bytes:
        # Very large spatial extent: also tile H*W on an "arbitrary" grid axis
        # with a VMEM partial-sum scratch, so per-buffer VMEM stays in the
        # 4-12 MiB sweet spot on every generation (incl. v7x's 64 MiB VMEM).
        tm = min_rows
        tc = _round_down(stage_budget_bytes // (min_rows * itemsize), 128)
        tc = min(tc, cols_pad)
        grid = (pl.cdiv(rows, tm), pl.cdiv(cols, tc))
        kernel = _make_rows_kernel_coltiled(eps=eps, cols=cols, tc=tc, static_p=static_p)
        x_spec = pl.BlockSpec((tm, tc), lambda i, j: (i, j))
        o_spec = pl.BlockSpec((tm, 1), lambda i, j: (i, 0))
        scratch = [pltpu.VMEM((tm, 1), jnp.float32)]
        sem = ("parallel", "arbitrary")
        est = 2 * tm * tc * itemsize + 2 * tm * row_out_bytes + tm * 128 * 4
    else:
        # Common case: whole H*W per block; size the row tile by BYTES (no row cap)
        # so small-H*W inputs are not step-overhead-bound.
        tm = _round_down(stage_budget_bytes // (row_in_bytes + row_out_bytes), min_rows)
        tm = max(min_rows, tm)
        if rows <= tm:
            tm = rows  # full-extent rows block (legal even if not a multiple of 8)
        grid = (pl.cdiv(rows, tm),)
        kernel = _make_rows_kernel_single(eps=eps, cols=cols, static_p=static_p)
        x_spec = pl.BlockSpec((tm, cols), lambda i: (i, 0))
        o_spec = pl.BlockSpec((tm, 1), lambda i: (i, 0))
        scratch = []
        sem = ("parallel",)
        est = 2 * tm * row_in_bytes + 2 * tm * row_out_bytes

    in_specs = [x_spec] if static_p is not None else [p_spec, x_spec]
    args = (x2d,) if static_p is not None else (p_arr, x2d)

    out2d = pl.pallas_call(
        kernel,
        out_shape=jax.ShapeDtypeStruct((rows, 1), x.dtype),
        grid=grid,
        in_specs=in_specs,
        out_specs=o_spec,
        scratch_shapes=scratch,
        compiler_params=pltpu.CompilerParams(
            # NOTE(v7x): switch the row axis to pltpu.CORE_PARALLEL if a trace
            # shows one idle TensorCore with plain "parallel".
            dimension_semantics=sem,
            vmem_limit_bytes=_vmem_limit_bytes(est, vmem_cap),
        ),
    )(*args)
    return out2d.reshape(B, C, 1, 1)


# --------------------------------------------------------------------------- #
# Pure-JAX reference                                                           #
# --------------------------------------------------------------------------- #

def gem_reference(x, p, eps=1e-6, work_with_tokens=False):
    pv = jnp.asarray(p, jnp.float32).reshape(-1)[0]
    xf = x.astype(jnp.float32)
    if work_with_tokens:
        xf = jnp.transpose(xf, (0, 2, 1))                       # (B, D, N)
        m = jnp.mean(jnp.maximum(xf, eps) ** pv, axis=-1)       # (B, D)
        out = (m ** (1.0 / pv))[..., None, None]                # (B, D, 1, 1)
    else:
        m = jnp.mean(jnp.maximum(xf, eps) ** pv, axis=(-2, -1), keepdims=True)
        out = m ** (1.0 / pv)
    return out.astype(x.dtype)


if __name__ == "__main__":
    key = jax.random.PRNGKey(0)
    p_param = jnp.ones((1,), dtype=jnp.float32) * 3.0   # nn.Parameter(torch.ones(1)*3)

    # (1) NCHW path, dynamic (learnable) p.
    B, C, H, W = 2, 4, 16, 16
    x = jax.random.uniform(key, (B, C, H, W), dtype=jnp.float32, minval=-1.0, maxval=2.0)
    out = gem_pallas(x, p_param)
    jax.block_until_ready(out)
    ref = gem_reference(x, p_param)
    assert out.shape == (B, C, 1, 1), out.shape
    assert jnp.allclose(out, ref, rtol=1e-4, atol=1e-5), (
        f"dynamic-p max abs diff {jnp.max(jnp.abs(out - ref))}")

    # (2) static-p fast path (frozen p == 3: integer_pow, no per-element exp/log).
    out_s = gem_pallas(x, p_param, static_p=3.0)
    jax.block_until_ready(out_s)
    assert jnp.allclose(out_s, ref, rtol=1e-4, atol=1e-5), (
        f"static-p max abs diff {jnp.max(jnp.abs(out_s - ref))}")

    # (3) tokens path: (B, N, D) pooled over tokens, no wrapper transpose.
    xt = jax.random.uniform(jax.random.PRNGKey(1), (2, 8, 32), dtype=jnp.float32,
                            minval=-1.0, maxval=2.0)
    out_t = gem_pallas(xt, p_param, work_with_tokens=True)
    jax.block_until_ready(out_t)
    ref_t = gem_reference(xt, p_param, work_with_tokens=True)
    assert out_t.shape == (2, 32, 1, 1), out_t.shape
    assert jnp.allclose(out_t, ref_t, rtol=1e-4, atol=1e-5), (
        f"tokens max abs diff {jnp.max(jnp.abs(out_t - ref_t))}")

    # (4) Force the col-tiled (large-H*W) kernel variant, incl. a ragged col tile.
    xc_ = jax.random.uniform(jax.random.PRNGKey(2), (2, 4, 18, 18), dtype=jnp.float32,
                             minval=-1.0, maxval=2.0)
    out_c = gem_pallas(xc_, p_param, stage_budget_bytes=8 * 256 * 4)
    jax.block_until_ready(out_c)
    ref_c = gem_reference(xc_, p_param)
    assert jnp.allclose(out_c, ref_c, rtol=1e-4, atol=1e-5), (
        f"col-tiled max abs diff {jnp.max(jnp.abs(out_c - ref_c))}")

    # (5) Force multiple (ragged) row tiles on the single-col kernel.
    xr = jax.random.uniform(jax.random.PRNGKey(3), (3, 5, 4, 4), dtype=jnp.float32,
                            minval=-1.0, maxval=2.0)
    out_r = gem_pallas(xr, p_param, stage_budget_bytes=8 * 1024)
    jax.block_until_ready(out_r)
    ref_r = gem_reference(xr, p_param)
    assert jnp.allclose(out_r, ref_r, rtol=1e-4, atol=1e-5), (
        f"ragged-rows max abs diff {jnp.max(jnp.abs(out_r - ref_r))}")

    # (6) Tokens path with ragged token tiles (exercises accumulate + mask).
    xt2 = jax.random.uniform(jax.random.PRNGKey(4), (2, 20, 32), dtype=jnp.float32,
                             minval=-1.0, maxval=2.0)
    out_t2 = gem_pallas(xt2, p_param, work_with_tokens=True, stage_budget_bytes=4096)
    jax.block_until_ready(out_t2)
    ref_t2 = gem_reference(xt2, p_param, work_with_tokens=True)
    assert jnp.allclose(out_t2, ref_t2, rtol=1e-4, atol=1e-5), (
        f"ragged-tokens max abs diff {jnp.max(jnp.abs(out_t2 - ref_t2))}")

    print("KERNEL_OK")
</pallas_src>

<mosaic_0001>
module attributes {stable_mosaic.version = 11 : i64} {
  func.func @kernel(%arg0: i32, %arg1: memref<1xf32, #tpu.memory_space<smem>>, %arg2: memref<8x256xf32, #tpu.memory_space<vmem>>, %arg3: memref<8x1xf32, #tpu.memory_space<vmem>>) attributes {dimension_semantics = [#tpu.dimension_semantics<parallel>], iteration_bounds = array<i64: 1>, scalar_prefetch = 0 : i64, scratch_operands = 0 : i64, tpu.core_type = #tpu.core_type<tc>, window_params = [{transform_indices = @transform_0, window_bounds = array<i64: 1>}, {transform_indices = @transform_1, window_bounds = array<i64: 8, 256>}, {transform_indices = @transform_2, window_bounds = array<i64: 8, 1>}]} {
    %c0 = arith.constant 0 : index
    %0 = memref.load %arg1[%c0] : memref<1xf32, #tpu.memory_space<smem>>
    %c0_0 = arith.constant 0 : index
    %c0_1 = arith.constant 0 : index
    %1 = vector.load %arg2[%c0_0, %c0_1] : memref<8x256xf32, #tpu.memory_space<vmem>>, vector<8x256xf32>
    %cst = arith.constant 9.99999997E-7 : f32
    %2 = vector.broadcast %cst : f32 to vector<8x256xf32>
    %3 = arith.maximumf %1, %2 : vector<8x256xf32>
    %4 = math.log %3 : vector<8x256xf32>
    %5 = vector.broadcast %0 : f32 to vector<8x256xf32>
    %6 = arith.mulf %5, %4 : vector<8x256xf32>
    %7 = math.exp %6 : vector<8x256xf32>
    %cst_2 = arith.constant dense<0.000000e+00> : vector<8xf32>
    %8 = vector.multi_reduction <add>, %7, %cst_2 [1] : vector<8x256xf32> to vector<8xf32>
    %9 = vector.shape_cast %8 : vector<8xf32> to vector<8x1xf32>
    %cst_3 = arith.constant 3.906250e-03 : f32
    %10 = vector.broadcast %cst_3 : f32 to vector<8x1xf32>
    %11 = arith.mulf %9, %10 : vector<8x1xf32>
    %12 = math.log %11 : vector<8x1xf32>
    %13 = vector.broadcast %0 : f32 to vector<8x1xf32>
    %14 = arith.divf %12, %13 : vector<8x1xf32>
    %15 = math.exp %14 : vector<8x1xf32>
    %c0_4 = arith.constant 0 : index
    %c0_5 = arith.constant 0 : index
    %16 = vector.load %arg3[%c0_4, %c0_5] : memref<8x1xf32, #tpu.memory_space<vmem>>, vector<8x1xf32>
    tpu.vector_store %arg3[%c0_4, %c0_5], %15 {strides = array<i32>} : memref<8x1xf32, #tpu.memory_space<vmem>>, vector<8x1xf32>,
    return
  }
  func.func @transform_0(%arg0: i32) -> i32 {
    %c0_i32 = arith.constant 0 : i32
    %c0_i32_0 = arith.constant 0 : i32
    return %c0_i32 : i32
  }
  func.func @transform_1(%arg0: i32) -> (i32, i32) {
    %c0_i32 = arith.constant 0 : i32
    %c0_i32_0 = arith.constant 0 : i32
    return %arg0, %c0_i32 : i32, i32
  }
  func.func @transform_2(%arg0: i32) -> (i32, i32) {
    %c0_i32 = arith.constant 0 : i32
    %c0_i32_0 = arith.constant 0 : i32
    return %arg0, %c0_i32 : i32, i32
  }
}

</mosaic_0001>

<llo_original>
// kernel: tpu_custom_call.1
$region0: #{tpu_custom_call.1}
  #allocation0 [shape = 'u32[]', space=smem, size = 0x4, offset = 0x4, fixed_abs, tag = 'smem constant byte address 0x4 - core index']
  #allocation1 [shape = 'u32[144,128]{1,0:T(1,128)}', space=vmem, size = 0x12000, scoped, tag = 'internal scratch']
  #allocation2 [shape = 'f32[1]{0:T(128)S(6)}', space=smem, size = 0x200, scoped, tag = 'scoped memory for tpu_custom_call.1']
  %s0 = inlined_call_operand.<no memory space> [shape: f32[1], index: 0, kind: input, shape index: {}]
  %s1 = inlined_call_operand.hbm [shape: f32[8,256], index: 1, kind: input, shape index: {}]
  %s2 = inlined_call_operand.vmem [shape: f32[8,1], index: 2, kind: output, shape index: {}]
  %s3 = sld [smem:[#allocation0]]
  $region22: #{tpu_custom_call.1} parent=0
    _
  %s5 = ssub.s32 1, %s3
  %s6 = scalar_select 0, %s5, %s3
  %7 = sst [smem:[#allocation2]] %s0
  $region1: #{tpu_custom_call.1} parent=0
    #allocation3 [shape = 'u8[8192]{0}', space=vmem, size = 0x2000, scoped, tag = 'input window, operand 1, single buffered']
    #allocation4 [shape = 's32[1]{0}', space=sflag, size = 0x4, scoped, tag = 'scoped memory for tpu_custom_call.1']
    %8 = vsyncpa [#allocation4], 0
    // Predicated region
    $region2: #{tpu_custom_call.1} parent=1 // pred_check
      _
    $region3: #{tpu_custom_call.1} parent=1 // pred_check_branch
      %10 = sbr.rel (0) target = $region5
    $region4: #{tpu_custom_call.1} parent=1 // pred_region
      _
    $region5: #{tpu_custom_call.1} parent=1 // pred_fallthru
      _
    // Predicated region
    $region6: #{tpu_custom_call.1} parent=1 // pred_check
      _
    $region7: #{tpu_custom_call.1} parent=1 // pred_check_branch
      %12 = sbr.rel (0) target = $region9
    $region8: #{tpu_custom_call.1} parent=1 // pred_region
      %s14 = ssub.s32 256, 256
      %15 = vsyncadd [#allocation4], %s14
      %s17 = sshll.u32 [#allocation3], 4
      %s18 = int_to_ptr.vmem [resolvable:$true] %s17
      %20 = dma.hbm_to_vmem [thread:$0]  %s1, 256, %s18, [#allocation4]
    $region9: #{tpu_custom_call.1} parent=1 // pred_fallthru
      _
    // Predicated region
    $region10: #{tpu_custom_call.1} parent=1 // pred_check
      _
    $region11: #{tpu_custom_call.1} parent=1 // pred_check_branch
      %22 = sbr.rel (0) target = $region13
    $region12: #{tpu_custom_call.1} parent=1 // pred_region
      %23 = dma.done [#allocation4], 256
    $region13: #{tpu_custom_call.1} parent=1 // pred_fallthru
      _
    %s24 = sld [smem:[#allocation2]]
    %v25 = vld [vmem:[#allocation3] sm:$0xff]
    %v26 = vld [vmem:[#allocation3 + $0x8] sm:$0xff]
    %v27 = vmax.f32 %v25, 1e-06
    %v28 = vmax.f32 %v26, 1e-06
    %v29 = vlog2.pop %v27
    %v30 = vmul.f32 %v29, 0.6931472
    %v31 = vlog2.pop %v28
    %v32 = vmul.f32 %v31, 0.6931472
    %v33 = vstv %s24
    %v34 = vmul.f32 %v33, %v30
    %v35 = vmul.f32 %v33, %v32
    %v36 = vmul.f32 %v34, 1.442695
    %v37 = vpow.pop %v36
    %v38 = vmul.f32 %v35, 1.442695
    %v39 = vpow.pop %v38
    %v40 = vadd.f32 %v37, %v39
    %41 = vadd.xlane.f32.xlu0 %v40
    %v42 = vpop.xlane.xlu0 %41
    %v43 = vmul.f32 %v42, 0.00390625
    %v44 = vlog2.pop %v43
    %v45 = vmul.f32 %v44, 0.6931472
    %v46 = vrcp.pop %v33
    %v47 = vmul.f32 %v45, %v46
    %v48 = vmul.f32 %v47, 1.442695
    %v49 = vpow.pop %v48
    %vm50 = vcmask 7168
    %51 = vst.msk [vmem:[%s2] sm:$0xff] %vm50, %v49
    // Predicated region
    $region14: #{tpu_custom_call.1} parent=1 // pred_check
      _
    $region15: #{tpu_custom_call.1} parent=1 // pred_check_branch
      %53 = sbr.rel (0) target = $region17
    $region16: #{tpu_custom_call.1} parent=1 // pred_region
      _
    $region17: #{tpu_custom_call.1} parent=1 // pred_fallthru
      _
    // Predicated region
    $region18: #{tpu_custom_call.1} parent=1 // pred_check
      _
    $region19: #{tpu_custom_call.1} parent=1 // pred_check_branch
      %55 = sbr.rel (0) target = $region21
    $region20: #{tpu_custom_call.1} parent=1 // pred_region
      _
    $region21: #{tpu_custom_call.1} parent=1 // pred_fallthru
      _
    %56 = vsyncpa [#allocation4], 1

</llo_original>
